<compile_context>
chip_gen: v7x
topology: tpu7x:2x2x1
jax: 0.10.0
libtpu: 0.0.40
codegen_flags: <defaults>
</compile_context>

<pallas_src>
import functools

import jax
import jax.numpy as jnp
from jax import lax
from jax.experimental import pallas as pl
from jax.experimental.pallas import tpu as pltpu


def _round_up(x, m):
    return ((x + m - 1) // m) * m


def _workset_bytes(tq, tk, d, itemsize=4):
    """Double-buffered VMEM footprint of one grid step (q, k, out tiles)."""
    return 2 * itemsize * (tq * tk + tq * d + tk * d)


def _splat_kernel(params_ref, q_ref, k_ref, o_ref, *, tq, tk, use_bf16):
    """One grid step writes one (tq, tk) tile of one batch's score map.

    params_ref : SMEM (2,)        -> [amplitude, 0.01 * amplitude]
    q_ref      : VMEM (1, tq, D)  -> pre-centered & pre-scaled query rows
    k_ref      : VMEM (1, tk, D)  -> pre-centered & pre-scaled key rows
    o_ref      : VMEM (1, tq, tk)
    """
    amp = params_ref[0]
    diag_add = params_ref[1]

    q = q_ref[0]                                   # (tq, D)
    k = k_ref[0]                                   # (tk, D)
    if use_bf16:
        q = q.astype(jnp.bfloat16)
        k = k.astype(jnp.bfloat16)

    # Contract dim 1 of both operands -> MXU directly, no k.T materialization.
    scores = lax.dot_general(
        q, k,
        dimension_numbers=(((1,), (1,)), ((), ())),
        preferred_element_type=jnp.float32,
    )                                              # (tq, tk)
    base = amp * scores

    # Global offsets of this tile; the identity term only exists on tiles that
    # intersect the global diagonal (with rectangular tiles the diagonal is in
    # general NOT the local r == c diagonal, hence the offset iotas).
    row0 = pl.program_id(1) * tq
    col0 = pl.program_id(2) * tk
    on_diag = jnp.logical_and(row0 < col0 + tk, col0 < row0 + tq)

    @pl.when(on_diag)
    def _():
        rows = lax.broadcasted_iota(jnp.int32, (tq, tk), 0) + row0
        cols = lax.broadcasted_iota(jnp.int32, (tq, tk), 1) + col0
        eye = (rows == cols).astype(jnp.float32)
        o_ref[0] = (base + diag_add * eye).astype(o_ref.dtype)

    @pl.when(jnp.logical_not(on_diag))
    def _():
        o_ref[0] = base.astype(o_ref.dtype)


def simplified_gsa_splat(queries, keys, center, log_scale, amplitude, *,
                         tq=256, tk=None,
                         vmem_budget_bytes=20 * (1 << 20),
                         use_bf16=False, out_dtype=None):
    """queries, keys: [B, T, D] float32.  Returns [B, T, T] (out_dtype)."""
    B, T, D = queries.shape
    out_dtype = jnp.dtype(queries.dtype) if out_dtype is None else jnp.dtype(out_dtype)

    # --- scalar math folded once, outside the grid -------------------------
    scale = jnp.clip(jnp.exp(log_scale.reshape(())), 1e-4, 10.0)
    amp = amplitude.reshape(()).astype(jnp.float32)
    params = jnp.stack([amp, 0.01 * amp])          # (2,) scalars -> SMEM

    # --- pre-center / pre-scale once (one fused O(B*T*D) XLA pass) ---------
    # Matches the reference's (x - c) / scale exactly; the kernel no longer
    # redoes this per (i, j) tile.
    c = center.reshape(1, 1, D).astype(queries.dtype)
    q_s = (queries - c) / scale
    k_s = (keys - c) / scale

    # --- tile selection -----------------------------------------------------
    # Rows: multiple of 8 (sublane), clamped near T.
    tq_eff = max(8, (min(int(tq), _round_up(T, 8)) // 8) * 8)
    # Columns (lane dim = HBM write run length): full row band if the
    # double-buffered working set fits the VMEM budget, else the largest
    # 128-multiple that does.  Tiny T (<=128): span the full axis.
    if tk is None:
        if T <= 128:
            tk_eff = T
        else:
            tk_eff = _round_up(T, 128)
            while tk_eff > 128 and _workset_bytes(tq_eff, tk_eff, D) > vmem_budget_bytes:
                tk_eff -= 128
    else:
        tk_eff = int(tk)

    ws = _workset_bytes(tq_eff, tk_eff, D)
    # Explicit scoped-VMEM limit: covers the working set plus headroom and is
    # safe on v5e/v6e (128 MiB physical) and v7x (64 MiB physical).
    vmem_limit = int(min(max(ws + (4 << 20), 16 << 20), 48 << 20))

    # No padding of inputs / no post-kernel slice: boundary tiles use Pallas'
    # masked edge handling (OOB reads are garbage that only feeds OOB output
    # entries; OOB writes are discarded).
    grid = (B, pl.cdiv(T, tq_eff), pl.cdiv(T, tk_eff))
    kernel = functools.partial(_splat_kernel, tq=tq_eff, tk=tk_eff,
                               use_bf16=use_bf16)

    out = pl.pallas_call(
        kernel,
        out_shape=jax.ShapeDtypeStruct((B, T, T), out_dtype),
        grid_spec=pltpu.PrefetchScalarGridSpec(
            num_scalar_prefetch=0,
            grid=grid,
            in_specs=[
                pl.BlockSpec(memory_space=pltpu.MemorySpace.SMEM),        # params (2,)
                pl.BlockSpec((1, tq_eff, D), lambda b, i, j: (b, i, 0)),  # queries
                pl.BlockSpec((1, tk_eff, D), lambda b, i, j: (b, j, 0)),  # keys
            ],
            out_specs=pl.BlockSpec((1, tq_eff, tk_eff),
                                   lambda b, i, j: (b, i, j)),
        ),
        compiler_params=pltpu.CompilerParams(
            # No reduction axis -> everything is parallel (v7x megacore split).
            dimension_semantics=("parallel", "parallel", "parallel"),
            vmem_limit_bytes=vmem_limit,
        ),
    )(params, q_s, k_s)
    return out


def _reference(queries, keys, center, log_scale, amplitude):
    """Pure-JAX reference mirroring PyTorch SimplifiedGSASplat.forward."""
    T = queries.shape[1]
    scale = jnp.clip(jnp.exp(log_scale), 1e-4, 10.0)
    q_s = (queries - center[None, None, :]) / scale
    k_s = (keys - center[None, None, :]) / scale
    scores = jnp.einsum("btd,bsd->bts", q_s, k_s,
                        precision=lax.Precision.HIGHEST)
    att = amplitude * scores
    att = att + 0.01 * amplitude * jnp.eye(T, dtype=queries.dtype)[None]
    return att


def _run_case(key, B, T, D, **kw):
    k_q, k_k, k_c, k_ls, k_a = jax.random.split(key, 5)
    queries = jax.random.normal(k_q, (B, T, D), dtype=jnp.float32)
    keys_in = jax.random.normal(k_k, (B, T, D), dtype=jnp.float32)
    # Mimic module init: center = randn(D)*0.5, log_scale = randn(1)*0.5,
    # amplitude = rand(1)*2.0.
    center = jax.random.normal(k_c, (D,), dtype=jnp.float32) * 0.5
    log_scale = jax.random.normal(k_ls, (1,), dtype=jnp.float32) * 0.5
    amplitude = jax.random.uniform(k_a, (1,), dtype=jnp.float32) * 2.0

    out = simplified_gsa_splat(queries, keys_in, center, log_scale, amplitude,
                               **kw)
    out = jax.block_until_ready(out)

    ref = _reference(queries, keys_in, center, log_scale[0], amplitude[0])
    assert out.shape == (B, T, T), out.shape
    err = float(jnp.max(jnp.abs(out - ref)))
    assert jnp.allclose(out, ref, atol=2e-3, rtol=2e-3), err


if __name__ == "__main__":
    base = jax.random.PRNGKey(0)
    k1, k2, k3 = jax.random.split(base, 3)

    # Per-head shape implied by ModelConfig (head_dim = 256/8 = 32), tiny seq:
    # single full-extent tile per batch, grid (2, 1, 1).
    _run_case(k1, B=2, T=8, D=32)

    # Multi-row-tile grid with a full-row (lane-dense) column band:
    # grid (2, 2, 1), diagonal term lands at different columns per row tile.
    _run_case(k2, B=2, T=256, D=32, tq=128)

    # T not a tile multiple: exercises masked boundary tiles (no padding, no
    # post-slice) and the off-diagonal "skip the eye" path (grid (2, 2, 2)).
    _run_case(k3, B=2, T=200, D=32, tq=128, tk=128)

    print("KERNEL_OK")
</pallas_src>

<mosaic_0001>
module attributes {stable_mosaic.version = 11 : i64} {
  func.func @_splat_kernel(%arg0: i32, %arg1: i32, %arg2: i32, %arg3: memref<2xf32, #tpu.memory_space<smem>>, %arg4: memref<1x8x32xf32, #tpu.memory_space<vmem>>, %arg5: memref<1x8x32xf32, #tpu.memory_space<vmem>>, %arg6: memref<1x8x8xf32, #tpu.memory_space<vmem>>) attributes {dimension_semantics = [#tpu.dimension_semantics<parallel>, #tpu.dimension_semantics<parallel>, #tpu.dimension_semantics<parallel>], iteration_bounds = array<i64: 2, 1, 1>, scalar_prefetch = 0 : i64, scratch_operands = 0 : i64, tpu.core_type = #tpu.core_type<tc>, window_params = [{transform_indices = @transform_0, window_bounds = array<i64: 2>}, {transform_indices = @transform_1, window_bounds = array<i64: 1, 8, 32>}, {transform_indices = @transform_2, window_bounds = array<i64: 1, 8, 32>}, {transform_indices = @transform_3, window_bounds = array<i64: 1, 8, 8>}]} {
    %c0 = arith.constant 0 : index
    %0 = memref.load %arg3[%c0] : memref<2xf32, #tpu.memory_space<smem>>
    %c1 = arith.constant 1 : index
    %1 = memref.load %arg3[%c1] : memref<2xf32, #tpu.memory_space<smem>>
    %c0_0 = arith.constant 0 : index
    %c0_1 = arith.constant 0 : index
    %c0_2 = arith.constant 0 : index
    %2 = vector.load %arg4[%c0_0, %c0_1, %c0_2] : memref<1x8x32xf32, #tpu.memory_space<vmem>>, vector<1x8x32xf32>
    %3 = vector.shape_cast %2 : vector<1x8x32xf32> to vector<8x32xf32>
    %c0_3 = arith.constant 0 : index
    %c0_4 = arith.constant 0 : index
    %c0_5 = arith.constant 0 : index
    %4 = vector.load %arg5[%c0_3, %c0_4, %c0_5] : memref<1x8x32xf32, #tpu.memory_space<vmem>>, vector<1x8x32xf32>
    %5 = vector.shape_cast %4 : vector<1x8x32xf32> to vector<8x32xf32>
    %cst = arith.constant dense<0.000000e+00> : vector<8x8xf32>
    %6 = tpu.matmul %3, %5, %cst {dimension_numbers = #tpu.dot_dimension_numbers<[1], [1], [0], [0], [0, 0, 1, 0], [], []>} : vector<8x32xf32>, vector<8x32xf32>, vector<8x8xf32> -> vector<8x8xf32>
    %7 = vector.broadcast %0 : f32 to vector<8x8xf32>
    %8 = arith.mulf %7, %6 : vector<8x8xf32>
    %c8_i32 = arith.constant 8 : i32
    %9 = arith.muli %arg1, %c8_i32 : i32
    %c8_i32_6 = arith.constant 8 : i32
    %10 = arith.muli %arg2, %c8_i32_6 : i32
    %c8_i32_7 = arith.constant 8 : i32
    %11 = arith.addi %10, %c8_i32_7 : i32
    %12 = arith.cmpi slt, %9, %11 : i32
    %c8_i32_8 = arith.constant 8 : i32
    %13 = arith.addi %9, %c8_i32_8 : i32
    %14 = arith.cmpi slt, %10, %13 : i32
    %15 = arith.andi %12, %14 : i1
    %16 = arith.extui %15 : i1 to i32
    %c0_i32 = arith.constant 0 : i32
    %17 = arith.cmpi ne, %16, %c0_i32 : i32
    scf.if %17 {
      %21 = tpu.iota {dimensions = array<i32: 0>} : vector<8x8xi32>
      %22 = vector.broadcast %9 : i32 to vector<8x8xi32>
      %23 = arith.addi %21, %22 : vector<8x8xi32>
      %24 = tpu.iota {dimensions = array<i32: 1>} : vector<8x8xi32>
      %25 = vector.broadcast %10 : i32 to vector<8x8xi32>
      %26 = arith.addi %24, %25 : vector<8x8xi32>
      %27 = arith.cmpi eq, %23, %26 : vector<8x8xi32>
      %28 = arith.extui %27 : vector<8x8xi1> to vector<8x8xi32>
      %29 = arith.sitofp %28 : vector<8x8xi32> to vector<8x8xf32>
      %30 = vector.broadcast %1 : f32 to vector<8x8xf32>
      %31 = arith.mulf %30, %29 : vector<8x8xf32>
      %32 = arith.addf %8, %31 : vector<8x8xf32>
      %c0_10 = arith.constant 0 : index
      %c0_11 = arith.constant 0 : index
      %c0_12 = arith.constant 0 : index
      %33 = vector.load %arg6[%c0_10, %c0_11, %c0_12] : memref<1x8x8xf32, #tpu.memory_space<vmem>>, vector<1x8x8xf32>
      %34 = vector.shape_cast %33 : vector<1x8x8xf32> to vector<8x8xf32>
      %35 = vector.shape_cast %32 : vector<8x8xf32> to vector<1x8x8xf32>
      tpu.vector_store %arg6[%c0_10, %c0_11, %c0_12], %35 {strides = array<i32>} : memref<1x8x8xf32, #tpu.memory_space<vmem>>, vector<1x8x8xf32>,
    } else {
    }
    %true = arith.constant true
    %18 = arith.xori %15, %true : i1
    %19 = arith.extui %18 : i1 to i32
    %c0_i32_9 = arith.constant 0 : i32
    %20 = arith.cmpi ne, %19, %c0_i32_9 : i32
    scf.if %20 {
      %c0_10 = arith.constant 0 : index
      %c0_11 = arith.constant 0 : index
      %c0_12 = arith.constant 0 : index
      %21 = vector.load %arg6[%c0_10, %c0_11, %c0_12] : memref<1x8x8xf32, #tpu.memory_space<vmem>>, vector<1x8x8xf32>
      %22 = vector.shape_cast %21 : vector<1x8x8xf32> to vector<8x8xf32>
      %23 = vector.shape_cast %8 : vector<8x8xf32> to vector<1x8x8xf32>
      tpu.vector_store %arg6[%c0_10, %c0_11, %c0_12], %23 {strides = array<i32>} : memref<1x8x8xf32, #tpu.memory_space<vmem>>, vector<1x8x8xf32>,
    } else {
    }
    return
  }
  func.func @transform_0(%arg0: i32, %arg1: i32, %arg2: i32) -> i32 {
    %c0_i32 = arith.constant 0 : i32
    %c0_i32_0 = arith.constant 0 : i32
    return %c0_i32 : i32
  }
  func.func @transform_1(%arg0: i32, %arg1: i32, %arg2: i32) -> (i32, i32, i32) {
    %c0_i32 = arith.constant 0 : i32
    %c0_i32_0 = arith.constant 0 : i32
    return %arg0, %arg1, %c0_i32 : i32, i32, i32
  }
  func.func @transform_2(%arg0: i32, %arg1: i32, %arg2: i32) -> (i32, i32, i32) {
    %c0_i32 = arith.constant 0 : i32
    %c0_i32_0 = arith.constant 0 : i32
    return %arg0, %arg2, %c0_i32 : i32, i32, i32
  }
  func.func @transform_3(%arg0: i32, %arg1: i32, %arg2: i32) -> (i32, i32, i32) {
    %c0_i32 = arith.constant 0 : i32
    return %arg0, %arg1, %arg2 : i32, i32, i32
  }
}

</mosaic_0001>

<llo_original>
// kernel: tpu_custom_call.1
$region0: #{tpu_custom_call.1}
  #allocation0 [shape = 'u32[]', space=smem, size = 0x4, offset = 0x4, fixed_abs, tag = 'smem constant byte address 0x4 - core index']
  #allocation1 [shape = 'u32[144,128]{1,0:T(1,128)}', space=vmem, size = 0x12000, scoped, tag = 'internal scratch']
  %s0 = inlined_call_operand.hbm [shape: f32[2], index: 0, kind: input, shape index: {}]
  %s1 = inlined_call_operand.hbm [shape: f32[2,8,32], index: 1, kind: input, shape index: {}]
  %s2 = inlined_call_operand.hbm [shape: f32[2,8,32], index: 2, kind: input, shape index: {}]
  %s3 = inlined_call_operand.hbm [shape: f32[2,8,8], index: 3, kind: output, shape index: {}]
  %s4 = sld [smem:[#allocation0]]
  $region65: #{tpu_custom_call.1} parent=0
    _
  %s6 = ssub.s32 1, %s4
  %s7 = scalar_select 0, %s6, %s4
  $region1: #{tpu_custom_call.1} parent=0
    #allocation2 [shape = 'u8[512]{0}', space=smem, size = 0x200, scoped, tag = 'input window, operand 0, single buffered']
    #allocation3 [shape = 's32[2]{0}', space=sflag, size = 0x8, scoped, tag = 'scoped memory for tpu_custom_call.1']
    #allocation4 [shape = 's32[2]{0}', space=sflag, size = 0x8, scoped, tag = 'scoped memory for tpu_custom_call.1']
    #allocation5 [shape = 's32[2]{0}', space=sflag, size = 0x8, scoped, tag = 'scoped memory for tpu_custom_call.1']
    #allocation6 [shape = 'u8[8192]{0}', space=vmem, size = 0x2000, scoped, tag = 'input window, operand 1']
    #allocation7 [shape = 'u8[8192]{0}', space=vmem, size = 0x2000, scoped, tag = 'input window, operand 2']
    #allocation8 [shape = 's32[2]{0}', space=sflag, size = 0x8, scoped, tag = 'scoped memory for tpu_custom_call.1']
    #allocation9 [shape = 'u8[8192]{0}', space=vmem, size = 0x2000, scoped, tag = 'output window, operand 0']
    %8 = vsyncpa [#allocation5], 0
    %9 = vsyncpa [#allocation3], 0
    %s10 = scalar_lea.sflag [#allocation3], 1
    %11 = vsyncpa %s10, 0
    %12 = vsyncpa [#allocation8], 0
    %s13 = scalar_lea.sflag [#allocation8], 1
    %14 = vsyncpa %s13, 0
    %15 = vsyncpa [#allocation4], 0
    %s16 = scalar_lea.sflag [#allocation4], 1
    %17 = vsyncpa %s16, 0
    loop: start=0, step=1, limit=4
    $region2: #{tpu_custom_call.1} parent=1 // loop_pre_header
      _
    $region3: #{tpu_custom_call.1} parent=1 // loop_header
      %s19 = sphi 0, %s23
      %p20 = scmp.ge.s32.totalorder %s19, 4
      %s26 = sphi 0, %s45
      %s27 = sphi 0, %s41
      %s28 = sphi 0, %s37
      %s29 = sphi 0, %s26
      %s30 = sphi 0, %s27
      %s31 = sphi 0, %s28
      %s32 = sphi 0, %s29
      %s33 = sphi 0, %s30
      %s34 = sphi 0, %s31
      %s46 = sphi 0, %s46
      %s48 = sphi 0, %s46
      %s49 = sphi 0, %s48
      %s63 = sphi 0, %s49
      %s71 = sphi 0, %s73
      %s74 = sphi 0, %s71
      %s75 = sphi 0, %s74
      %s91 = sphi 0, %s75
      %s99 = sphi 0, %s101
      %s102 = sphi 0, %s99
      %s103 = sphi 0, %s102
      %s119 = sphi 0, %s103
      %s129 = sphi 0, %s131
      %s132 = sphi 0, %s129
      %s133 = sphi 0, %s132
      %s149 = sphi 0, %s133
    $region4: #{tpu_custom_call.1} parent=1 // loop_header_branch
      %22 = sbr.rel (%p20) target = $region8
    $region5: #{tpu_custom_call.1} parent=1 // loop_body
      %s24 = ssub.s32 %s19, 1
      %s25 = ssub.s32 %s19, 2
      %s35 = sadd.s32 1, %s28
      %p36 = scmp.ge.s32.totalorder %s35, 1
      %s37 = scalar_select %p36, 0, %s35
      %s38 = sadd.s32 1, %s27
      %s39 = scalar_select %p36, %s38, %s27
      %p40 = scmp.ge.s32.totalorder %s39, 1
      %s41 = scalar_select %p40, 0, %s39
      %s42 = sadd.s32 1, %s26
      %s43 = scalar_select %p40, %s42, %s26
      %p44 = scmp.ge.s32.totalorder %s43, 2
      %s45 = scalar_select %p44, 0, %s43
      %s47 = sadd.s32 %s46, 1
      %p50 = scmp.eq.s32.totalorder %s19, 1
      %p51 = scmp.ne.s32.totalorder %s46, %s48
      %p52 = scmp.eq.s32.totalorder %s19, 0
      %p53 = por %p51, %p52
      %p54 = scmp.ne.s32.totalorder %s46, %s48
      %p55 = scmp.eq.s32.totalorder %s24, 1
      %p56 = por %p54, %p55
      %p57 = scmp.ne.s32.totalorder %s48, %s49
      %p58 = scmp.eq.s32.totalorder %s24, 0
      %p59 = por %p57, %p58
      %p60 = scmp.ne.s32.totalorder %s48, %s49
      %p61 = scmp.eq.s32.totalorder %s25, 1
      %p62 = por %p60, %p61
      %p64 = scmp.ne.s32.totalorder %s49, %s63
      %p65 = scmp.eq.s32.totalorder %s25, 0
      %p66 = por %p64, %p65
      %s67 = ssub.s32 %s26, %s45
      %s68 = ssub.s32 %s27, %s41
      %s69 = sor.u32 %s67, %s68
      %p70 = scmp.eq.s32.totalorder %s69, 0
      %s72 = sadd.s32 %s71, 1
      %s73 = scalar_select %p70, %s71, %s72
      %p76 = pneg %p70
      %p77 = scmp.eq.s32.totalorder %s19, 1
      %p78 = por %p76, %p77
      %p79 = scmp.ne.s32.totalorder %s71, %s74
      %p80 = scmp.eq.s32.totalorder %s19, 0
      %p81 = por %p79, %p80
      %p82 = scmp.ne.s32.totalorder %s71, %s74
      %p83 = scmp.eq.s32.totalorder %s24, 1
      %p84 = por %p82, %p83
      %p85 = scmp.ne.s32.totalorder %s74, %s75
      %p86 = scmp.eq.s32.totalorder %s24, 0
      %p87 = por %p85, %p86
      %p88 = scmp.ne.s32.totalorder %s74, %s75
      %p89 = scmp.eq.s32.totalorder %s25, 1
      %p90 = por %p88, %p89
      %p92 = scmp.ne.s32.totalorder %s75, %s91
      %p93 = scmp.eq.s32.totalorder %s25, 0
      %p94 = por %p92, %p93
      %s95 = ssub.s32 %s26, %s45
      %s96 = ssub.s32 %s28, %s37
      %s97 = sor.u32 %s95, %s96
      %p98 = scmp.eq.s32.totalorder %s97, 0
      %s100 = sadd.s32 %s99, 1
      %s101 = scalar_select %p98, %s99, %s100
      %p104 = pneg %p98
      %p105 = scmp.eq.s32.totalorder %s19, 1
      %p106 = por %p104, %p105
      %p107 = scmp.ne.s32.totalorder %s99, %s102
      %p108 = scmp.eq.s32.totalorder %s19, 0
      %p109 = por %p107, %p108
      %p110 = scmp.ne.s32.totalorder %s99, %s102
      %p111 = scmp.eq.s32.totalorder %s24, 1
      %p112 = por %p110, %p111
      %p113 = scmp.ne.s32.totalorder %s102, %s103
      %p114 = scmp.eq.s32.totalorder %s24, 0
      %p115 = por %p113, %p114
      %p116 = scmp.ne.s32.totalorder %s102, %s103
      %p117 = scmp.eq.s32.totalorder %s25, 1
      %p118 = por %p116, %p117
      %p120 = scmp.ne.s32.totalorder %s103, %s119
      %p121 = scmp.eq.s32.totalorder %s25, 0
      %p122 = por %p120, %p121
      %s123 = ssub.s32 %s26, %s45
      %s124 = ssub.s32 %s27, %s41
      %s125 = sor.u32 %s123, %s124
      %s126 = ssub.s32 %s28, %s37
      %s127 = sor.u32 %s125, %s126
      %p128 = scmp.eq.s32.totalorder %s127, 0
      %s130 = sadd.s32 %s129, 1
      %s131 = scalar_select %p128, %s129, %s130
      %p134 = pneg %p128
      %p135 = scmp.eq.s32.totalorder %s19, 1
      %p136 = por %p134, %p135
      %p137 = scmp.ne.s32.totalorder %s129, %s132
      %p138 = scmp.eq.s32.totalorder %s19, 0
      %p139 = por %p137, %p138
      %p140 = scmp.ne.s32.totalorder %s129, %s132
      %p141 = scmp.eq.s32.totalorder %s24, 1
      %p142 = por %p140, %p141
      %p143 = scmp.ne.s32.totalorder %s132, %s133
      %p144 = scmp.eq.s32.totalorder %s24, 0
      %p145 = por %p143, %p144
      %p146 = scmp.ne.s32.totalorder %s132, %s133
      %p147 = scmp.eq.s32.totalorder %s25, 1
      %p148 = por %p146, %p147
      %p150 = scmp.ne.s32.totalorder %s133, %s149
      %p151 = scmp.eq.s32.totalorder %s25, 0
      %p152 = por %p150, %p151
      %p153 = scmp.le.s32.totalorder 1, %s19
      %p154 = scmp.lt.s32.totalorder %s19, 3
      %p155 = pnand %p153, %p154
      %p156 = pneg %p155
      // Predicated region
      $region9: #{tpu_custom_call.1} parent=5 // pred_check
        _
      $region10: #{tpu_custom_call.1} parent=5 // pred_check_branch
        %158 = sbr.rel (%p155) target = $region12
      $region11: #{tpu_custom_call.1} parent=5 // pred_region
        %s159 = ssub.s32 %s19, 1
        // Predicated region
        $region13: #{tpu_custom_call.1} parent=11 // pred_check
          %p160 = pneg %p59
        $region14: #{tpu_custom_call.1} parent=11 // pred_check_branch
          %162 = sbr.rel (%p160) target = $region16
        $region15: #{tpu_custom_call.1} parent=11 // pred_region
          %s164 = ssub.s32 16, 16
          %165 = vsyncadd [#allocation5], %s164
          %168 = dma.hbm_to_smem %s0, 16, [#allocation2], [#allocation5]
        $region16: #{tpu_custom_call.1} parent=11 // pred_fallthru
          _
      $region12: #{tpu_custom_call.1} parent=5 // pred_fallthru
        _
      %p169 = scmp.lt.s32.totalorder %s19, 2
      // Predicated region
      $region17: #{tpu_custom_call.1} parent=5 // pred_check
        %p170 = pneg %p169
      $region18: #{tpu_custom_call.1} parent=5 // pred_check_branch
        %172 = sbr.rel (%p170) target = $region20
      $region19: #{tpu_custom_call.1} parent=5 // pred_region
        // Predicated region
        $region21: #{tpu_custom_call.1} parent=19 // pred_check
          %p173 = pneg %p81
        $region22: #{tpu_custom_call.1} parent=19 // pred_check_branch
          %175 = sbr.rel (%p173) target = $region24
        $region23: #{tpu_custom_call.1} parent=19 // pred_region
          %s176 = sand.u32 %s71, 1
          %s177 = scalar_lea.sflag [#allocation3], %s176
          %s178 = sand.u32 %s71, 1
          %s179 = smul.addr %s178, 8
          %s180 = scalar_lea.vmem [#allocation6], %s179
          %s182 = ssub.s32 128, 128
          %183 = vsyncadd %s177, %s182
          %s184 = sadd.s32 %s27, %s26
          %s185 = smul.addr %s184, 128
          %s186 = scalar_lea.hbm %s1, %s185
          %s188 = sshll.u32 %s180, 4
          %s189 = int_to_ptr.vmem [resolvable:$true] %s188
          %191 = dma.hbm_to_vmem [thread:$0]  %s186, 128, %s189, %s177
        $region24: #{tpu_custom_call.1} parent=19 // pred_fallthru
          _
        // Predicated region
        $region25: #{tpu_custom_call.1} parent=19 // pred_check
          %p192 = pneg %p109
        $region26: #{tpu_custom_call.1} parent=19 // pred_check_branch
          %194 = sbr.rel (%p192) target = $region28
        $region27: #{tpu_custom_call.1} parent=19 // pred_region
          %s195 = sand.u32 %s99, 1
          %s196 = scalar_lea.sflag [#allocation8], %s195
          %s197 = sand.u32 %s99, 1
          %s198 = smul.addr %s197, 8
          %s199 = scalar_lea.vmem [#allocation7], %s198
          %s201 = ssub.s32 128, 128
          %202 = vsyncadd %s196, %s201
          %s203 = sadd.s32 %s28, %s26
          %s204 = smul.addr %s203, 128
          %s205 = scalar_lea.hbm %s2, %s204
          %s207 = sshll.u32 %s199, 4
          %s208 = int_to_ptr.vmem [resolvable:$true] %s207
          %210 = dma.hbm_to_vmem [thread:$0]  %s205, 128, %s208, %s196
        $region28: #{tpu_custom_call.1} parent=19 // pred_fallthru
          _
      $region20: #{tpu_custom_call.1} parent=5 // pred_fallthru
        _
      %p211 = scmp.le.s32.totalorder 1, %s19
      %p212 = scmp.lt.s32.totalorder %s19, 3
      %p213 = pnand %p211, %p212
      %p214 = pneg %p213
      // Predicated region
      $region29: #{tpu_custom_call.1} parent=5 // pred_check
        _
      $region30: #{tpu_custom_call.1} parent=5 // pred_check_branch
        %216 = sbr.rel (%p213) target = $region32
      $region31: #{tpu_custom_call.1} parent=5 // pred_region
        %s217 = ssub.s32 %s19, 1
        // Predicated region
        $region33: #{tpu_custom_call.1} parent=31 // pred_check
          %p218 = pneg %p59
        $region34: #{tpu_custom_call.1} parent=31 // pred_check_branch
          %220 = sbr.rel (%p218) target = $region36
        $region35: #{tpu_custom_call.1} parent=31 // pred_region
          %221 = dma.done [#allocation5], 16
        $region36: #{tpu_custom_call.1} parent=31 // pred_fallthru
          _
        %s222 = sand.u32 %s74, 1
        %s223 = scalar_lea.sflag [#allocation3], %s222
        %s224 = sand.u32 %s74, 1
        %s225 = smul.addr %s224, 8
        %s226 = scalar_lea.vmem [#allocation6], %s225
        // Predicated region
        $region37: #{tpu_custom_call.1} parent=31 // pred_check
          %p227 = pneg %p87
        $region38: #{tpu_custom_call.1} parent=31 // pred_check_branch
          %229 = sbr.rel (%p227) target = $region40
        $region39: #{tpu_custom_call.1} parent=31 // pred_region
          %230 = dma.done %s223, 128
        $region40: #{tpu_custom_call.1} parent=31 // pred_fallthru
          _
        %s231 = sand.u32 %s102, 1
        %s232 = scalar_lea.sflag [#allocation8], %s231
        %s233 = sand.u32 %s102, 1
        %s234 = smul.addr %s233, 8
        %s235 = scalar_lea.vmem [#allocation7], %s234
        // Predicated region
        $region41: #{tpu_custom_call.1} parent=31 // pred_check
          %p236 = pneg %p115
        $region42: #{tpu_custom_call.1} parent=31 // pred_check_branch
          %238 = sbr.rel (%p236) target = $region44
        $region43: #{tpu_custom_call.1} parent=31 // pred_region
          %239 = dma.done %s232, 128
        $region44: #{tpu_custom_call.1} parent=31 // pred_fallthru
          _
        %240 = sfence
        %p241 = pneg %p59
        %p242 = pneg %p56
        %s243 = sand.u32 %s74, 1
        %s244 = scalar_lea.sflag [#allocation3], %s243
        %s245 = sand.u32 %s74, 1
        %s246 = smul.addr %s245, 8
        %s247 = scalar_lea.vmem [#allocation6], %s246
        %p248 = pneg %p87
        %p249 = pneg %p84
        %s250 = sand.u32 %s102, 1
        %s251 = scalar_lea.sflag [#allocation8], %s250
        %s252 = sand.u32 %s102, 1
        %s253 = smul.addr %s252, 8
        %s254 = scalar_lea.vmem [#allocation7], %s253
        %p255 = pneg %p115
        %p256 = pneg %p112
        %p257 = pneg %p145
        %p258 = pneg %p142
        %s259 = sand.u32 %s132, 1
        %s260 = scalar_lea.sflag [#allocation4], %s259
        %s261 = sand.u32 %s132, 1
        %s262 = smul.addr %s261, 8
        %s263 = scalar_lea.vmem [#allocation9], %s262
        %s264 = sld [smem:[#allocation2]]
        %s265 = sld [smem:[#allocation2 + $0x1]]
        %v266 = vld [vmem:[%s226] sm:$0xff]
        %v267 = vld [vmem:[%s235] sm:$0xff]
        %vm268 = vcmask 261120
        %v270 = vsel %vm268, %v266, 0
        %v273 = vsel %vm268, %v267, 0
        %275 = vmatprep.subr.mxu0 0.0
        %276 = vmatpush1.xpose.msra.mxu0 %v273
        %277 = vmatprep.subr.mxu0 0.0
        %278 = vmatpush1.xpose.msra.mxu0 0.0
        %279 = vmatprep.subr.mxu0 0.0
        %280 = vmatpush1.xpose.msra.mxu0 0.0
        %281 = vmatprep.subr.mxu0 0.0
        %282 = vmatpush1.xpose.msra.mxu0 0.0
        %283 = vmatprep.subr.mxu0 0.0
        %284 = vmatpush1.xpose.msra.mxu0 0.0
        %285 = vmatprep.subr.mxu0 0.0
        %286 = vmatpush1.xpose.msra.mxu0 0.0
        %287 = vmatprep.subr.mxu0 0.0
        %288 = vmatpush1.xpose.msra.mxu0 0.0
        %289 = vmatprep.subr.mxu0 0.0
        %290 = vmatpush1.xpose.msra.mxu0 0.0
        %291 = vmatprep.subr.mxu0 0.0
        %292 = vmatpush1.xpose.msra.mxu0 0.0
        %293 = vmatprep.subr.mxu0 0.0
        %294 = vmatpush1.xpose.msra.mxu0 0.0
        %295 = vmatprep.subr.mxu0 0.0
        %296 = vmatpush1.xpose.msra.mxu0 0.0
        %297 = vmatprep.subr.mxu0 0.0
        %298 = vmatpush1.xpose.msra.mxu0 0.0
        %299 = vmatprep.subr.mxu0 0.0
        %300 = vmatpush1.xpose.msra.mxu0 0.0
        %301 = vmatprep.subr.mxu0 0.0
        %302 = vmatpush1.xpose.msra.mxu0 0.0
        %303 = vmatprep.subr.mxu0 0.0
        %304 = vmatpush1.xpose.msra.mxu0 0.0
        %305 = vmatprep.subr.mxu0 0.0
        %306 = vmatpush1.xpose.msra.mxu0 0.0
        %307 = vmatprep.subr.mxu0 0.0
        %308 = vmatpush1.xpose.msra.mxu0 0.0
        %309 = vmatprep.subr.mxu0 0.0
        %310 = vmatpush1.xpose.msra.mxu0 0.0
        %311 = vmatprep.subr.mxu0 0.0
        %312 = vmatpush1.xpose.msra.mxu0 0.0
        %313 = vmatprep.subr.mxu0 0.0
        %314 = vmatpush1.xpose.msra.mxu0 0.0
        %315 = vmatprep.subr.mxu0 0.0
        %316 = vmatpush1.xpose.msra.mxu0 0.0
        %317 = vmatprep.subr.mxu0 0.0
        %318 = vmatpush1.xpose.msra.mxu0 0.0
        %319 = vmatprep.subr.mxu0 0.0
        %320 = vmatpush1.xpose.msra.mxu0 0.0
        %321 = vmatprep.subr.mxu0 0.0
        %322 = vmatpush1.xpose.msra.mxu0 0.0
        %323 = vmatprep.subr.mxu0 0.0
        %324 = vmatpush1.xpose.msra.mxu0 0.0
        %325 = vmatprep.subr.mxu0 0.0
        %326 = vmatpush1.xpose.msra.mxu0 0.0
        %327 = vmatprep.subr.mxu0 0.0
        %328 = vmatpush1.xpose.msra.mxu0 0.0
        %329 = vmatprep.subr.mxu0 0.0
        %330 = vmatpush1.xpose.msra.mxu0 0.0
        %331 = vmatprep.subr.mxu0 0.0
        %332 = vmatpush1.xpose.msra.mxu0 0.0
        %333 = vmatprep.subr.mxu0 0.0
        %334 = vmatpush1.xpose.msra.mxu0 0.0
        %335 = vmatprep.subr.mxu0 0.0
        %336 = vmatpush1.xpose.msra.mxu0 0.0
        %337 = vmatprep.subr.mxu0 0.0
        %338 = vmatpush1.xpose.msra.mxu0 0.0
        %339 = vmatprep.mubr.f32.mxu0 0.0
        %340 = vmatmul.mubr.f32.gmra.mrb[0].mxu0 %v270
        %v341 = vpop.f32.mrb[0].mxu0
        %v342 = vadd.f32 0.0, %v341
        %v343 = vpop.f32.mrb[0].mxu0
        %344 = vdwg.mxu0
        %v345 = vstv %s264
        %v346 = vmul.f32 %v345, %v342
        %s347 = smul.u32 %s30, 8
        %s348 = smul.u32 %s31, 8
        %s349 = sadd.s32 %s348, 8
        %p350 = scmp.lt.s32.totalorder %s347, %s349
        %s351 = sadd.s32 %s347, 8
        %p352 = scmp.lt.s32.totalorder %s348, %s351
        %p353 = pnand %p350, %p352
        %p354 = pneg %p353
        // Predicated region
        $region45: #{tpu_custom_call.1} parent=31 // pred_check
          _
        $region46: #{tpu_custom_call.1} parent=31 // pred_check_branch
          %356 = sbr.rel (%p353) target = $region48
        $region47: #{tpu_custom_call.1} parent=31 // pred_region
          %v357 = vlaneseq
          %v358 = vshrl.u32 %v357, 7
          %v359 = vstv %s347
          %v360 = vadd.s32 %v358, %v359
          %v361 = vlaneseq
          %v362 = vand.u32 %v361, 127
          %v363 = vstv %s348
          %v364 = vadd.s32 %v362, %v363
          %vm365 = vcmp.eq.s32.totalorder %v360, %v364
          %v366 = vsel %vm365, 1, 0
          %v367 = vcvt.s32.f32 %v366
          %v368 = vstv %s265
          %v369 = vmul.f32 %v368, %v367
          %v370 = vadd.f32 %v346, %v369
          %vm371 = vcmask 64512
          %372 = vst.msk [vmem:[%s263] sm:$0xff] %vm371, %v370
        $region48: #{tpu_custom_call.1} parent=31 // pred_fallthru
          _
        %p373 = pneg %p354
        // Predicated region
        $region49: #{tpu_custom_call.1} parent=31 // pred_check
          _
        $region50: #{tpu_custom_call.1} parent=31 // pred_check_branch
          %375 = sbr.rel (%p354) target = $region52
        $region51: #{tpu_custom_call.1} parent=31 // pred_region
          %vm376 = vcmask 64512
          %377 = vst.msk [vmem:[%s263] sm:$0xff] %vm376, %v346
        $region52: #{tpu_custom_call.1} parent=31 // pred_fallthru
          _
        %s378 = sand.u32 %s132, 1
        %s379 = scalar_lea.sflag [#allocation4], %s378
        %s380 = sand.u32 %s132, 1
        %s381 = smul.addr %s380, 8
        %s382 = scalar_lea.vmem [#allocation9], %s381
        // Predicated region
        $region53: #{tpu_custom_call.1} parent=31 // pred_check
          %p383 = pneg %p142
        $region54: #{tpu_custom_call.1} parent=31 // pred_check_branch
          %385 = sbr.rel (%p383) target = $region56
        $region55: #{tpu_custom_call.1} parent=31 // pred_region
          %s387 = ssub.s32 128, 128
          %388 = vsyncadd %s379, %s387
          %s389 = sadd.s32 %s31, %s30
          %s390 = sadd.s32 %s389, %s29
          %s391 = smul.addr %s390, 128
          %s392 = scalar_lea.hbm %s3, %s391
          %s394 = sshll.u32 %s382, 4
          %s395 = int_to_ptr.vmem [resolvable:$true] %s394
          %397 = dma.vmem_to_hbm [thread:$0]  %s395, 128, %s392, %s379
        $region56: #{tpu_custom_call.1} parent=31 // pred_fallthru
          _
      $region32: #{tpu_custom_call.1} parent=5 // pred_fallthru
        _
      %p398 = scmp.le.s32.totalorder 2, %s19
      // Predicated region
      $region57: #{tpu_custom_call.1} parent=5 // pred_check
        %p399 = pneg %p398
      $region58: #{tpu_custom_call.1} parent=5 // pred_check_branch
        %401 = sbr.rel (%p399) target = $region60
      $region59: #{tpu_custom_call.1} parent=5 // pred_region
        %s402 = ssub.s32 %s19, 2
        // Predicated region
        $region61: #{tpu_custom_call.1} parent=59 // pred_check
          %p403 = pneg %p148
        $region62: #{tpu_custom_call.1} parent=59 // pred_check_branch
          %405 = sbr.rel (%p403) target = $region64
        $region63: #{tpu_custom_call.1} parent=59 // pred_region
          %s406 = sand.u32 %s133, 1
          %s407 = scalar_lea.sflag [#allocation4], %s406
          %s408 = sand.u32 %s133, 1
          %s409 = smul.addr %s408, 8
          %s410 = scalar_lea.vmem [#allocation9], %s409
          %411 = dma.done %s407, 128
        $region64: #{tpu_custom_call.1} parent=59 // pred_fallthru
          _
      $region60: #{tpu_custom_call.1} parent=5 // pred_fallthru
        _
    $region6: #{tpu_custom_call.1} parent=1 // loop_footer
      %s23 = sadd.s32 1, %s19
    $region7: #{tpu_custom_call.1} parent=1 // loop_footer_branch
      %18 = sbr.rel target = $region3
    $region8: #{tpu_custom_call.1} parent=1 // loop_exit
      _
    %412 = vsyncpa [#allocation3], 1
    %s413 = scalar_lea.sflag [#allocation3], 1
    %414 = vsyncpa %s413, 1
    %415 = vsyncpa [#allocation8], 1
    %s416 = scalar_lea.sflag [#allocation8], 1
    %417 = vsyncpa %s416, 1
    %418 = vsyncpa [#allocation4], 1
    %s419 = scalar_lea.sflag [#allocation4], 1
    %420 = vsyncpa %s419, 1
    %421 = vsyncpa [#allocation5], 1
    %s422 = scalar_lea.sflag [#allocation5], 1
    %423 = vsyncpa %s422, 1

</llo_original>
